<compile_context>
chip_gen: v5e
topology: v5e:2x2
jax: 0.10.0
libtpu: 0.0.40
codegen_flags: <defaults>
</compile_context>

<pallas_src>
import math

import jax
import jax.numpy as jnp
from jax import lax
from jax.experimental import pallas as pl
from jax.experimental.pallas import tpu as pltpu


# ---------------------------------------------------------------------------
# Pallas kernel
# ---------------------------------------------------------------------------
def _nsp_linear_kernel(x_ref, w_ref, b_ref, o_ref):
    # x: (tm, Din), w: (Dout, Din), b: (1, Dout)  ->  o: (tm, Dout)
    # Contract on the last dim of both operands (x @ w^T) without any
    # explicit transpose — free on the MXU.  f32 accumulation.
    acc = lax.dot_general(
        x_ref[...],
        w_ref[...],
        dimension_numbers=(((1,), (1,)), ((), ())),
        preferred_element_type=jnp.float32,
    )
    o_ref[...] = (acc + b_ref[...].astype(jnp.float32)).astype(o_ref.dtype)


# ---------------------------------------------------------------------------
# Tile / VMEM budgeting helpers
# ---------------------------------------------------------------------------
def _vmem_capacity_bytes():
    try:
        return int(pltpu.get_tpu_info().vmem_capacity_bytes)
    except Exception:
        return 128 * 1024 * 1024  # conservative v5e/v6e default


def _pick_tm_and_vmem_limit(M, Din, Dout, x_itemsize, w_itemsize, out_itemsize,
                            tm_max):
    """Pick the row tile and a scoped-VMEM limit from the chip's VMEM size."""
    vmem_cap = _vmem_capacity_bytes()
    # Use at most 1/4 of physical VMEM for our pipelined buffers; leaves
    # plenty of headroom for compiler scratch (v7x: 16 MiB, v5e/v6e: 32 MiB).
    budget = vmem_cap // 4
    fixed = Dout * Din * w_itemsize + Dout * 4          # resident weight + bias
    per_row = 2 * (Din * x_itemsize + Dout * out_itemsize)  # double-buffered
    tm_budget = max(8, (budget - fixed) // max(per_row, 1))
    tm = int(min(tm_max, tm_budget))
    tm = max(8, (tm // 8) * 8)          # keep sublane-aligned row tiles
    if M <= tm:
        tm = M                          # single block: full-dim block is legal
    # Scoped VMEM limit: half of physical — always >= what the tile needs,
    # and explicitly above v5e's 16 MiB default.
    vmem_limit = int(min(vmem_cap, max(vmem_cap // 2, 32 * 1024 * 1024)))
    return tm, vmem_limit


def _row_axis_semantics():
    """CORE_PARALLEL only on v7x (2 TCs/chip); plain 'parallel' elsewhere."""
    kind = ""
    try:
        kind = jax.devices()[0].device_kind.lower()
    except Exception:
        pass
    if "v7" in kind:
        try:
            return (pltpu.CORE_PARALLEL,)
        except Exception:
            pass
    return ("parallel",)


# ---------------------------------------------------------------------------
# Wrapper
# ---------------------------------------------------------------------------
def next_sentence_pred(X, W, b, *, tm_max=2048, min_pallas_rows=1024,
                       force_pallas=False):
    """X: (..., Din); W: (Dout, Din) PyTorch Linear layout; b: (Dout,)."""
    lead = X.shape[:-1]
    Din = X.shape[-1]
    Dout = W.shape[0]
    M = int(math.prod(lead)) if lead else 1
    out_dtype = X.dtype

    # Small-M fast path: launch + per-step overhead dominates a sub-µs op and
    # XLA fuses the bias add anyway.  The Pallas path pays off once the X
    # stream dominates.
    if not force_pallas and M < min_pallas_rows:
        out = (jnp.einsum("...d,od->...o", X, W,
                          preferred_element_type=jnp.float32)
               + b.astype(jnp.float32))
        return out.astype(out_dtype)

    x2 = X.reshape(M, Din)
    b2 = b.reshape(1, Dout)

    tm, vmem_limit = _pick_tm_and_vmem_limit(
        M, Din, Dout,
        x_itemsize=x2.dtype.itemsize,
        w_itemsize=W.dtype.itemsize,
        out_itemsize=jnp.dtype(out_dtype).itemsize,
        tm_max=tm_max,
    )
    grid = (pl.cdiv(M, tm),)

    cost = pl.CostEstimate(
        flops=2 * M * Din * Dout,
        transcendentals=0,
        bytes_accessed=(M * Din * x2.dtype.itemsize
                        + Dout * Din * W.dtype.itemsize
                        + Dout * 4
                        + M * Dout * jnp.dtype(out_dtype).itemsize),
    )

    out = pl.pallas_call(
        _nsp_linear_kernel,
        out_shape=jax.ShapeDtypeStruct((M, Dout), out_dtype),
        grid_spec=pltpu.PrefetchScalarGridSpec(
            num_scalar_prefetch=0,
            grid=grid,
            in_specs=[
                pl.BlockSpec((tm, Din), lambda i: (i, 0)),     # activations
                pl.BlockSpec((Dout, Din), lambda i: (0, 0)),   # weight (no .T)
                pl.BlockSpec((1, Dout), lambda i: (0, 0)),     # bias
            ],
            out_specs=pl.BlockSpec((tm, Dout), lambda i: (i, 0)),
        ),
        compiler_params=pltpu.CompilerParams(
            dimension_semantics=_row_axis_semantics(),
            vmem_limit_bytes=vmem_limit,
        ),
        cost_estimate=cost,
    )(x2, W, b2)

    return out.reshape(*lead, Dout)


# ---------------------------------------------------------------------------
# Pure-JAX reference (mirrors nn.Linear(num_inputs, 2))
# ---------------------------------------------------------------------------
def reference(X, W, b):
    return jnp.einsum("...d,od->...o", X, W) + b


# ---------------------------------------------------------------------------
if __name__ == "__main__":
    key = jax.random.PRNGKey(0)
    ks = jax.random.split(key, 5)

    batch, num_inputs = 2, 32           # NSP head input: pooled CLS vectors
    num_outputs = 2

    X = jax.random.normal(ks[0], (batch, num_inputs), jnp.float32)
    scale = 0.1
    W = scale * jax.random.normal(ks[1], (num_outputs, num_inputs), jnp.float32)
    b = scale * jax.random.normal(ks[2], (num_outputs,), jnp.float32)

    # Force the Pallas path so the kernel itself is exercised (single block).
    out = next_sentence_pred(X, W, b, force_pallas=True)
    out = jax.block_until_ready(out)
    ref = reference(X, W, b)
    assert out.shape == (batch, num_outputs)
    assert out.dtype == X.dtype
    assert jnp.allclose(out, ref, atol=1e-5, rtol=1e-5), "mismatch vs reference"

    # Exercise the multi-block (tiled) grid path with a small 3-D input.
    X3 = jax.random.normal(ks[3], (3, 16, num_inputs), jnp.float32)  # M = 48
    out3 = next_sentence_pred(X3, W, b, tm_max=16, force_pallas=True)
    out3 = jax.block_until_ready(out3)
    ref3 = reference(X3, W, b)
    assert out3.shape == (3, 16, num_outputs)
    assert jnp.allclose(out3, ref3, atol=1e-5, rtol=1e-5), "tiled mismatch"

    # Default path (small-M fast path) also matches.
    out_fast = jax.block_until_ready(next_sentence_pred(X, W, b))
    assert jnp.allclose(out_fast, ref, atol=1e-5, rtol=1e-5), "fast-path mismatch"

    print("KERNEL_OK")
</pallas_src>

<mosaic_0001>
module attributes {stable_mosaic.version = 11 : i64} {
  func.func @_nsp_linear_kernel(%arg0: i32, %arg1: memref<2x32xf32, #tpu.memory_space<vmem>>, %arg2: memref<2x32xf32, #tpu.memory_space<vmem>>, %arg3: memref<1x2xf32, #tpu.memory_space<vmem>>, %arg4: memref<2x2xf32, #tpu.memory_space<vmem>>) attributes {dimension_semantics = [#tpu.dimension_semantics<parallel>], iteration_bounds = array<i64: 1>, scalar_prefetch = 0 : i64, scratch_operands = 0 : i64, tpu.core_type = #tpu.core_type<tc>, window_params = [{transform_indices = @transform_0, window_bounds = array<i64: 2, 32>}, {pipeline_mode = #tpu.pipeline_mode<synchronous>, transform_indices = @transform_1, window_bounds = array<i64: 2, 32>}, {pipeline_mode = #tpu.pipeline_mode<synchronous>, transform_indices = @transform_2, window_bounds = array<i64: 1, 2>}, {transform_indices = @transform_3, window_bounds = array<i64: 2, 2>}]} {
    %c0 = arith.constant 0 : index
    %c0_0 = arith.constant 0 : index
    %0 = vector.load %arg1[%c0, %c0_0] : memref<2x32xf32, #tpu.memory_space<vmem>>, vector<2x32xf32>
    %c0_1 = arith.constant 0 : index
    %c0_2 = arith.constant 0 : index
    %1 = vector.load %arg2[%c0_1, %c0_2] : memref<2x32xf32, #tpu.memory_space<vmem>>, vector<2x32xf32>
    %cst = arith.constant dense<0.000000e+00> : vector<2x2xf32>
    %2 = tpu.matmul %0, %1, %cst {dimension_numbers = #tpu.dot_dimension_numbers<[1], [1], [0], [0], [0, 0, 1, 0], [], []>} : vector<2x32xf32>, vector<2x32xf32>, vector<2x2xf32> -> vector<2x2xf32>
    %c0_3 = arith.constant 0 : index
    %c0_4 = arith.constant 0 : index
    %3 = vector.load %arg3[%c0_3, %c0_4] : memref<1x2xf32, #tpu.memory_space<vmem>>, vector<1x2xf32>
    %4 = vector.broadcast %3 : vector<1x2xf32> to vector<2x2xf32>
    %5 = arith.addf %2, %4 : vector<2x2xf32>
    %c0_5 = arith.constant 0 : index
    %c0_6 = arith.constant 0 : index
    %6 = vector.load %arg4[%c0_5, %c0_6] : memref<2x2xf32, #tpu.memory_space<vmem>>, vector<2x2xf32>
    tpu.vector_store %arg4[%c0_5, %c0_6], %5 {strides = array<i32>} : memref<2x2xf32, #tpu.memory_space<vmem>>, vector<2x2xf32>,
    return
  }
  func.func @transform_0(%arg0: i32) -> (i32, i32) {
    %c0_i32 = arith.constant 0 : i32
    %c0_i32_0 = arith.constant 0 : i32
    return %arg0, %c0_i32 : i32, i32
  }
  func.func @transform_1(%arg0: i32) -> (i32, i32) {
    %c0_i32 = arith.constant 0 : i32
    %c0_i32_0 = arith.constant 0 : i32
    %c0_i32_1 = arith.constant 0 : i32
    return %c0_i32, %c0_i32_0 : i32, i32
  }
  func.func @transform_2(%arg0: i32) -> (i32, i32) {
    %c0_i32 = arith.constant 0 : i32
    %c0_i32_0 = arith.constant 0 : i32
    %c0_i32_1 = arith.constant 0 : i32
    return %c0_i32, %c0_i32_0 : i32, i32
  }
  func.func @transform_3(%arg0: i32) -> (i32, i32) {
    %c0_i32 = arith.constant 0 : i32
    %c0_i32_0 = arith.constant 0 : i32
    return %arg0, %c0_i32 : i32, i32
  }
}

</mosaic_0001>

<llo_original>
// kernel: tpu_custom_call.1
$region0: #{tpu_custom_call.1}
  #allocation0 [shape = 'u32[]', space=smem, size = 0x4, offset = 0x4, fixed_abs, tag = 'smem constant byte address 0x4 - core index']
  #allocation1 [shape = 'u32[72,128]{1,0:T(1,128)}', space=vmem, size = 0x9000, scoped, tag = 'internal scratch']
  %s0 = inlined_call_operand.hbm [shape: f32[2,32], index: 0, kind: input, shape index: {}]
  %s1 = inlined_call_operand.hbm [shape: f32[2,32], index: 1, kind: input, shape index: {}]
  %s2 = inlined_call_operand.vmem [shape: f32[1,2], index: 2, kind: input, shape index: {}]
  %s3 = inlined_call_operand.hbm [shape: f32[2,2], index: 3, kind: output, shape index: {}]
  %s4 = sld [smem:[#allocation0]]
  $region30: #{tpu_custom_call.1} parent=0
    _
  %s6 = ssub.s32 1, %s4
  %s7 = scalar_select 0, %s6, %s4
  $region1: #{tpu_custom_call.1} parent=0
    #allocation2 [shape = 'u8[1024]{0}', space=vmem, size = 0x400, scoped, tag = 'input window, operand 0, single buffered']
    #allocation3 [shape = 's32[1]{0}', space=sflag, size = 0x4, scoped, tag = 'scoped memory for tpu_custom_call.1']
    #allocation4 [shape = 's32[1]{0}', space=sflag, size = 0x4, scoped, tag = 'scoped memory for tpu_custom_call.1']
    #allocation5 [shape = 'u8[1024]{0}', space=vmem, size = 0x400, scoped, tag = 'input window, operand 1, single buffered']
    #allocation6 [shape = 's32[1]{0}', space=sflag, size = 0x4, scoped, tag = 'scoped memory for tpu_custom_call.1']
    #allocation7 [shape = 'u8[1024]{0}', space=vmem, size = 0x400, scoped, tag = 'output window, operand 0, single buffered']
    %8 = vsyncpa [#allocation3], 0
    %9 = vsyncpa [#allocation6], 0
    %10 = vsyncpa [#allocation4], 0
    // Predicated region
    $region2: #{tpu_custom_call.1} parent=1 // pred_check
      _
    $region3: #{tpu_custom_call.1} parent=1 // pred_check_branch
      %12 = sbr.rel (0) target = $region5
    $region4: #{tpu_custom_call.1} parent=1 // pred_region
      %14 = vsyncadd [#allocation3], 0
      %s16 = sshll.u32 %s0, 4
      %s17 = int_to_ptr.hbm [resolvable:$true] %s16
      %s18 = sshll.u32 [#allocation2], 4
      %s19 = int_to_ptr.vmem [resolvable:$true] %s18
      %21 = dma.hbm_to_vmem [thread:$0]  %s17, 32, %s19, [#allocation3]
    $region5: #{tpu_custom_call.1} parent=1 // pred_fallthru
      _
    // Predicated region
    $region6: #{tpu_custom_call.1} parent=1 // pred_check
      _
    $region7: #{tpu_custom_call.1} parent=1 // pred_check_branch
      %23 = sbr.rel (0) target = $region9
    $region8: #{tpu_custom_call.1} parent=1 // pred_region
      %25 = vsyncadd [#allocation6], 0
      %s27 = sshll.u32 %s1, 4
      %s28 = int_to_ptr.hbm [resolvable:$true] %s27
      %s29 = sshll.u32 [#allocation5], 4
      %s30 = int_to_ptr.vmem [resolvable:$true] %s29
      %32 = dma.hbm_to_vmem [thread:$0]  %s28, 32, %s30, [#allocation6]
    $region9: #{tpu_custom_call.1} parent=1 // pred_fallthru
      _
    // Predicated region
    $region10: #{tpu_custom_call.1} parent=1 // pred_check
      _
    $region11: #{tpu_custom_call.1} parent=1 // pred_check_branch
      %34 = sbr.rel (0) target = $region13
    $region12: #{tpu_custom_call.1} parent=1 // pred_region
      _
    $region13: #{tpu_custom_call.1} parent=1 // pred_fallthru
      _
    // Predicated region
    $region14: #{tpu_custom_call.1} parent=1 // pred_check
      _
    $region15: #{tpu_custom_call.1} parent=1 // pred_check_branch
      %36 = sbr.rel (0) target = $region17
    $region16: #{tpu_custom_call.1} parent=1 // pred_region
      %38 = dma.done [#allocation3], 32
    $region17: #{tpu_custom_call.1} parent=1 // pred_fallthru
      _
    // Predicated region
    $region18: #{tpu_custom_call.1} parent=1 // pred_check
      _
    $region19: #{tpu_custom_call.1} parent=1 // pred_check_branch
      %40 = sbr.rel (0) target = $region21
    $region20: #{tpu_custom_call.1} parent=1 // pred_region
      %42 = dma.done [#allocation6], 32
    $region21: #{tpu_custom_call.1} parent=1 // pred_fallthru
      _
    %v43 = vld [vmem:[#allocation2] sm:$0x3]
    %v44 = vld [vmem:[#allocation5] sm:$0x3]
    %v45 = vld [vmem:[%s2] sm:$0x1]
    %v47 = vperm.slane %v45, 0
    %vm49 = vcmask 261120
    %v51 = vsel %vm49, %v43, 0
    %v54 = vsel %vm49, %v44, 0
    %56 = vmatpush.xpose.msra.mxu0 0.0
    %57 = vmatpush.xpose.msra.mxu0 0.0
    %58 = vmatpush.xpose.msra.mxu0 0.0
    %59 = vmatpush.xpose.msra.mxu0 0.0
    %60 = vmatpush.xpose.msra.mxu0 0.0
    %61 = vmatpush.xpose.msra.mxu0 0.0
    %62 = vmatpush.xpose.msra.mxu0 0.0
    %63 = vmatpush.xpose.msra.mxu0 0.0
    %64 = vmatpush.xpose.msra.mxu0 0.0
    %65 = vmatpush.xpose.msra.mxu0 0.0
    %66 = vmatpush.xpose.msra.mxu0 0.0
    %67 = vmatpush.xpose.msra.mxu0 0.0
    %68 = vmatpush.xpose.msra.mxu0 0.0
    %69 = vmatpush.xpose.msra.mxu0 0.0
    %70 = vmatpush.xpose.msra.mxu0 0.0
    %71 = vmatpush.xpose.msra.mxu0 %v54
    %72 = vmatmul.f32.gmra.mxu0 %v51
    %v73 = vpop.f32.mrf.mxu0
    %v74 = vadd.f32 %v47, %v73
    %75 = vdwg.mxu0
    %vm76 = vcmask 9216
    %77 = vst.msk [vmem:[#allocation7] sm:$0x3] %vm76, %v74
    // Predicated region
    $region22: #{tpu_custom_call.1} parent=1 // pred_check
      _
    $region23: #{tpu_custom_call.1} parent=1 // pred_check_branch
      %79 = sbr.rel (0) target = $region25
    $region24: #{tpu_custom_call.1} parent=1 // pred_region
      %81 = vsyncadd [#allocation4], 0
      %s83 = sshll.u32 [#allocation7], 4
      %s84 = int_to_ptr.vmem [resolvable:$true] %s83
      %s85 = sshll.u32 %s3, 4
      %s86 = int_to_ptr.hbm [resolvable:$true] %s85
      %88 = dma.vmem_to_hbm [thread:$0]  %s84, 32, %s86, [#allocation4]
    $region25: #{tpu_custom_call.1} parent=1 // pred_fallthru
      _
    // Predicated region
    $region26: #{tpu_custom_call.1} parent=1 // pred_check
      _
    $region27: #{tpu_custom_call.1} parent=1 // pred_check_branch
      %90 = sbr.rel (0) target = $region29
    $region28: #{tpu_custom_call.1} parent=1 // pred_region
      %92 = dma.done [#allocation4], 32
    $region29: #{tpu_custom_call.1} parent=1 // pred_fallthru
      _
    %93 = vsyncpa [#allocation3], 1
    %94 = vsyncpa [#allocation6], 1
    %95 = vsyncpa [#allocation4], 1

</llo_original>
